<compile_context>
chip_gen: v7x
topology: tpu7x:2x2x1
jax: 0.10.0
libtpu: 0.0.40
codegen_flags: <defaults>
</compile_context>

<pallas_src>
import jax
import jax.numpy as jnp
from jax.experimental import pallas as pl
from jax.experimental.pallas import tpu as pltpu


# ----------------------------------------------------------------------------
# Kernel 1: GraphAddPooling (scatter-add as one-hot matmul), node axis tiled,
#           leading "parallel" core axis producing per-core partial sums.
# ----------------------------------------------------------------------------
def pool_kernel(batch_ref, x_ref, partial_ref):
    """One node tile: partial_ref (G, dim_in) += onehot(batch) @ x_tile."""
    i = pl.program_id(1)                       # node-tile index within this core
    n_graphs = partial_ref.shape[0]
    tile_n = x_ref.shape[0]

    @pl.when(i == 0)
    def _():
        partial_ref[...] = jnp.zeros_like(partial_ref)

    seg = batch_ref[...]                                           # (1, tile_n) int32
    gids = jax.lax.broadcasted_iota(jnp.int32, (n_graphs, tile_n), 0)
    x_tile = x_ref[...]
    onehot = (gids == seg).astype(x_tile.dtype)                    # {0,1} exact
    # Low MXU occupancy is fine here: the loop is HBM/overhead bound.
    partial_ref[...] += jnp.dot(onehot, x_tile,
                                preferred_element_type=jnp.float32)


# ----------------------------------------------------------------------------
# Kernel 2: combine per-core partials + the (L+1)-layer MLP head. Runs once.
# ----------------------------------------------------------------------------
def make_head_kernel(n_layers):
    def head_kernel(*refs):
        partial_ref = refs[0]
        out_ref = refs[-1]
        wb = refs[1:-1]
        h = jnp.sum(partial_ref[...], axis=0)                      # (G, dim_in) f32
        for l in range(n_layers):
            w_ref, b_ref = wb[2 * l], wb[2 * l + 1]
            h = jnp.dot(h, w_ref[...],
                        preferred_element_type=jnp.float32) + b_ref[...]
            if l < n_layers - 1:
                h = jnp.maximum(h, 0.0)                            # SimpleReLU
        out_ref[...] = h.astype(out_ref.dtype)
    return head_kernel


# ----------------------------------------------------------------------------
# Wrapper mirroring SANGraphHead.forward(batch) -> (pred, label)
# ----------------------------------------------------------------------------
def san_graph_head_forward(x, batch_idx, y, params, num_graphs, *,
                           tile_n=4096, ncores=2):
    num_nodes, dim_in = x.shape
    dim_out = params[-1][0].shape[1]

    # Portability: integer node features would not lower on v7x's fp-only MXU.
    if not jnp.issubdtype(x.dtype, jnp.floating):
        x = x.astype(jnp.float32)

    if batch_idx is None:
        batch_idx = jnp.zeros((num_nodes,), jnp.int32)
    batch_idx = batch_idx.astype(jnp.int32)

    # --- tile sizing -------------------------------------------------------
    # Clamp tile_n to what this input needs (avoids huge padding for tiny
    # inputs) while keeping it a multiple of 128 for layout legality.
    tile_n = max(128, pl.cdiv(tile_n, 128) * 128)
    max_useful = max(128, pl.cdiv(pl.cdiv(num_nodes, ncores), 128) * 128)
    tile_n = min(tile_n, max_useful)

    # Pad the node axis so it splits evenly into ncores * num_tiles_per_core.
    chunk = ncores * tile_n
    n_pad = pl.cdiv(num_nodes, chunk) * chunk
    if n_pad != num_nodes:
        x = jnp.pad(x, ((0, n_pad - num_nodes), (0, 0)))
        batch_idx = jnp.pad(batch_idx, (0, n_pad - num_nodes),
                            constant_values=-1)
    batch_2d = batch_idx.reshape(1, n_pad)
    tiles_per_core = n_pad // chunk

    bpe = x.dtype.itemsize
    cost = pl.CostEstimate(
        flops=2 * num_graphs * n_pad * dim_in,
        transcendentals=0,
        bytes_accessed=n_pad * dim_in * bpe + n_pad * 4
                       + ncores * num_graphs * dim_in * 4,
    )

    # --- pooling: per-core partial sums -------------------------------------
    partials = pl.pallas_call(
        pool_kernel,
        out_shape=jax.ShapeDtypeStruct((ncores, num_graphs, dim_in),
                                       jnp.float32),
        grid=(ncores, tiles_per_core),
        in_specs=[
            pl.BlockSpec((1, tile_n),
                         lambda c, i: (0, c * tiles_per_core + i)),
            pl.BlockSpec((tile_n, dim_in),
                         lambda c, i: (c * tiles_per_core + i, 0)),
        ],
        # Per-core resident accumulator block (leading dim squeezed).
        out_specs=pl.BlockSpec((None, num_graphs, dim_in),
                               lambda c, i: (c, 0, 0)),
        compiler_params=pltpu.CompilerParams(
            # core axis shards across TCs (v7x); node axis is a reduction.
            dimension_semantics=("parallel", "arbitrary"),
            vmem_limit_bytes=32 * 1024 * 1024,
        ),
        cost_estimate=cost,
    )(batch_2d, x)

    # --- combine + MLP head: single-shot pallas_call -------------------------
    flat_wb = []
    for w, b in params:
        flat_wb.append(w)
        flat_wb.append(b.reshape(1, -1))

    pred = pl.pallas_call(
        make_head_kernel(len(params)),
        out_shape=jax.ShapeDtypeStruct((num_graphs, dim_out), jnp.float32),
    )(partials, *flat_wb)

    return pred, y


def init_params(key, dim_in, dim_out, L=2):
    """Deterministic init of the L+1 Linear layers (weights stored as [in, out])."""
    params = []
    d = dim_in
    for l in range(L + 1):
        d_out = dim_out if l == L else dim_in // 2 ** (l + 1)
        key, kw, kb = jax.random.split(key, 3)
        bound = 1.0 / jnp.sqrt(d)
        w = jax.random.uniform(kw, (d, d_out), jnp.float32, -bound, bound)
        b = jax.random.uniform(kb, (d_out,), jnp.float32, -bound, bound)
        params.append((w, b))
        d = d_out
    return params


if __name__ == "__main__":
    # Small, shape-consistent synthetic problem (ragged vs. tile_n on purpose).
    dim_in, dim_out, L = 32, 1, 2
    num_graphs = 4
    graph_sizes = [80, 70, 90, 60]          # 300 nodes total, sorted PyG-style
    num_nodes = sum(graph_sizes)

    key = jax.random.PRNGKey(0)
    key, kx, ky = jax.random.split(key, 3)

    x = jax.random.normal(kx, (num_nodes, dim_in), jnp.float32)
    batch_idx = jnp.concatenate(
        [jnp.full((s,), g, dtype=jnp.int32) for g, s in enumerate(graph_sizes)])
    y = jax.random.normal(ky, (num_graphs, dim_out), jnp.float32)

    params = init_params(key, dim_in, dim_out, L)

    pred, label = san_graph_head_forward(x, batch_idx, y, params, num_graphs)
    jax.block_until_ready(pred)
    jax.block_until_ready(label)

    # Pure-JAX reference (scatter-add pooling + MLP).
    pooled_ref = jnp.zeros((num_graphs, dim_in), jnp.float32).at[batch_idx].add(x)
    h_ref = pooled_ref
    for l in range(L):
        w, b = params[l]
        h_ref = jnp.maximum(h_ref @ w + b, 0.0)
    w, b = params[L]
    pred_ref = h_ref @ w + b

    assert pred.shape == (num_graphs, dim_out)
    assert jnp.allclose(pred, pred_ref, atol=1e-4, rtol=1e-4), "mismatch vs reference"
    assert jnp.allclose(label, y), "label passthrough mismatch"

    print("KERNEL_OK")
</pallas_src>

<mosaic_0001>
module attributes {stable_mosaic.version = 11 : i64} {
  func.func @pool_kernel(%arg0: i32, %arg1: i32, %arg2: memref<1x256xi32, #tpu.memory_space<vmem>>, %arg3: memref<256x32xf32, #tpu.memory_space<vmem>>, %arg4: memref<1x4x32xf32, #tpu.memory_space<vmem>>) attributes {dimension_semantics = [#tpu.dimension_semantics<parallel>, #tpu.dimension_semantics<arbitrary>], iteration_bounds = array<i64: 2, 1>, scalar_prefetch = 0 : i64, scratch_operands = 0 : i64, tpu.core_type = #tpu.core_type<tc>, window_params = [{transform_indices = @transform_0, window_bounds = array<i64: 1, 256>}, {transform_indices = @transform_1, window_bounds = array<i64: 256, 32>}, {transform_indices = @transform_2, window_bounds = array<i64: 1, 4, 32>}]} {
    %c0_i32 = arith.constant 0 : i32
    %0 = arith.cmpi eq, %arg1, %c0_i32 : i32
    %1 = arith.extui %0 : i1 to i32
    %c0_i32_0 = arith.constant 0 : i32
    %2 = arith.cmpi ne, %1, %c0_i32_0 : i32
    scf.if %2 {
      %cst_10 = arith.constant 0.000000e+00 : f32
      %17 = vector.broadcast %cst_10 : f32 to vector<4x32xf32>
      %c0_11 = arith.constant 0 : index
      %c0_12 = arith.constant 0 : index
      %c0_13 = arith.constant 0 : index
      %18 = vector.load %arg4[%c0_11, %c0_12, %c0_13] : memref<1x4x32xf32, #tpu.memory_space<vmem>>, vector<1x4x32xf32>
      %19 = vector.shape_cast %18 : vector<1x4x32xf32> to vector<4x32xf32>
      %20 = vector.shape_cast %17 : vector<4x32xf32> to vector<1x4x32xf32>
      tpu.vector_store %arg4[%c0_11, %c0_12, %c0_13], %20 {strides = array<i32>} : memref<1x4x32xf32, #tpu.memory_space<vmem>>, vector<1x4x32xf32>,
    } else {
    }
    %c0 = arith.constant 0 : index
    %c0_1 = arith.constant 0 : index
    %3 = vector.load %arg2[%c0, %c0_1] : memref<1x256xi32, #tpu.memory_space<vmem>>, vector<1x256xi32>
    %4 = tpu.iota {dimensions = array<i32: 0>} : vector<4x256xi32>
    %c0_2 = arith.constant 0 : index
    %c0_3 = arith.constant 0 : index
    %5 = vector.load %arg3[%c0_2, %c0_3] : memref<256x32xf32, #tpu.memory_space<vmem>>, vector<256x32xf32>
    %6 = vector.broadcast %3 : vector<1x256xi32> to vector<4x256xi32>
    %7 = arith.cmpi eq, %4, %6 : vector<4x256xi32>
    %8 = arith.extui %7 : vector<4x256xi1> to vector<4x256xi32>
    %9 = arith.sitofp %8 : vector<4x256xi32> to vector<4x256xf32>
    %c0_4 = arith.constant 0 : index
    %c0_5 = arith.constant 0 : index
    %c0_6 = arith.constant 0 : index
    %10 = vector.load %arg4[%c0_4, %c0_5, %c0_6] : memref<1x4x32xf32, #tpu.memory_space<vmem>>, vector<1x4x32xf32>
    %11 = vector.shape_cast %10 : vector<1x4x32xf32> to vector<4x32xf32>
    %cst = arith.constant dense<0.000000e+00> : vector<4x32xf32>
    %12 = tpu.matmul %9, %5, %cst {dimension_numbers = #tpu.dot_dimension_numbers<[1], [0], [0], [1], [0, 0, 1, 1], [], []>} : vector<4x256xf32>, vector<256x32xf32>, vector<4x32xf32> -> vector<4x32xf32>
    %13 = arith.addf %11, %12 : vector<4x32xf32>
    %c0_7 = arith.constant 0 : index
    %c0_8 = arith.constant 0 : index
    %c0_9 = arith.constant 0 : index
    %14 = vector.load %arg4[%c0_7, %c0_8, %c0_9] : memref<1x4x32xf32, #tpu.memory_space<vmem>>, vector<1x4x32xf32>
    %15 = vector.shape_cast %14 : vector<1x4x32xf32> to vector<4x32xf32>
    %16 = vector.shape_cast %13 : vector<4x32xf32> to vector<1x4x32xf32>
    tpu.vector_store %arg4[%c0_7, %c0_8, %c0_9], %16 {strides = array<i32>} : memref<1x4x32xf32, #tpu.memory_space<vmem>>, vector<1x4x32xf32>,
    return
  }
  func.func @transform_0(%arg0: i32, %arg1: i32) -> (i32, i32) {
    %c1_i32 = arith.constant 1 : i32
    %0 = arith.muli %arg0, %c1_i32 : i32
    %1 = arith.addi %0, %arg1 : i32
    %c0_i32 = arith.constant 0 : i32
    %c0_i32_0 = arith.constant 0 : i32
    return %c0_i32, %1 : i32, i32
  }
  func.func @transform_1(%arg0: i32, %arg1: i32) -> (i32, i32) {
    %c1_i32 = arith.constant 1 : i32
    %0 = arith.muli %arg0, %c1_i32 : i32
    %1 = arith.addi %0, %arg1 : i32
    %c0_i32 = arith.constant 0 : i32
    %c0_i32_0 = arith.constant 0 : i32
    return %1, %c0_i32 : i32, i32
  }
  func.func @transform_2(%arg0: i32, %arg1: i32) -> (i32, i32, i32) {
    %c0_i32 = arith.constant 0 : i32
    %c0_i32_0 = arith.constant 0 : i32
    %c0_i32_1 = arith.constant 0 : i32
    return %arg0, %c0_i32, %c0_i32_0 : i32, i32, i32
  }
}

</mosaic_0001>

<llo_original>
// kernel: tpu_custom_call.1
$region0: #{tpu_custom_call.1}
  #allocation0 [shape = 'u32[]', space=smem, size = 0x4, offset = 0x4, fixed_abs, tag = 'smem constant byte address 0x4 - core index']
  #allocation1 [shape = 'u32[144,128]{1,0:T(1,128)}', space=vmem, size = 0x12000, scoped, tag = 'internal scratch']
  %s0 = inlined_call_operand.vmem [shape: s32[1,512], index: 0, kind: input, shape index: {}]
  %s1 = inlined_call_operand.vmem [shape: f32[512,32], index: 1, kind: input, shape index: {}]
  %s2 = inlined_call_operand.hbm [shape: f32[2,4,32], index: 2, kind: output, shape index: {}]
  %s3 = sld [smem:[#allocation0]]
  $region45: #{tpu_custom_call.1} parent=0
    _
  %s5 = ssub.s32 1, %s3
  %s6 = scalar_select 0, %s5, %s3
  $region1: #{tpu_custom_call.1} parent=0
    #allocation2 [shape = 'u8[4096]{0}', space=vmem, size = 0x1000, scoped, tag = 'output window, operand 0']
    #allocation3 [shape = 's32[2]{0}', space=sflag, size = 0x8, scoped, tag = 'scoped memory for tpu_custom_call.1']
    %7 = vsyncpa [#allocation3], 0
    %s8 = scalar_lea.sflag [#allocation3], 1
    %9 = vsyncpa %s8, 0
    loop: start=0, step=1, limit=4
    $region2: #{tpu_custom_call.1} parent=1 // loop_pre_header
      _
    $region3: #{tpu_custom_call.1} parent=1 // loop_header
      %s11 = sphi 0, %s15
      %p12 = scmp.ge.s32.totalorder %s11, 4
      %s18 = sphi 0, %s30
      %s19 = sphi 0, %s26
      %s20 = sphi 0, %s18
      %s21 = sphi 0, %s19
      %s22 = sphi 0, %s20
      %s23 = sphi 0, %s21
      %s35 = sphi 0, %s37
      %s38 = sphi 0, %s35
      %s39 = sphi 0, %s38
      %s55 = sphi 0, %s39
      %s63 = sphi 0, %s65
      %s66 = sphi 0, %s63
      %s67 = sphi 0, %s66
      %s83 = sphi 0, %s67
      %s89 = sphi 0, %s91
      %s92 = sphi 0, %s89
      %s93 = sphi 0, %s92
      %s109 = sphi 0, %s93
    $region4: #{tpu_custom_call.1} parent=1 // loop_header_branch
      %14 = sbr.rel (%p12) target = $region8
    $region5: #{tpu_custom_call.1} parent=1 // loop_body
      %s16 = ssub.s32 %s11, 1
      %s17 = ssub.s32 %s11, 2
      %s24 = sadd.s32 1, %s19
      %p25 = scmp.ge.s32.totalorder %s24, 1
      %s26 = scalar_select %p25, 0, %s24
      %s27 = sadd.s32 1, %s18
      %s28 = scalar_select %p25, %s27, %s18
      %p29 = scmp.ge.s32.totalorder %s28, 2
      %s30 = scalar_select %p29, 0, %s28
      %s31 = sadd.s32 %s18, %s19
      %s32 = sadd.s32 %s30, %s26
      %s33 = ssub.s32 %s31, %s32
      %p34 = scmp.eq.s32.totalorder %s33, 0
      %s36 = sadd.s32 %s35, 1
      %s37 = scalar_select %p34, %s35, %s36
      %p40 = pneg %p34
      %p41 = scmp.eq.s32.totalorder %s11, 1
      %p42 = por %p40, %p41
      %p43 = scmp.ne.s32.totalorder %s35, %s38
      %p44 = scmp.eq.s32.totalorder %s11, 0
      %p45 = por %p43, %p44
      %p46 = scmp.ne.s32.totalorder %s35, %s38
      %p47 = scmp.eq.s32.totalorder %s16, 1
      %p48 = por %p46, %p47
      %p49 = scmp.ne.s32.totalorder %s38, %s39
      %p50 = scmp.eq.s32.totalorder %s16, 0
      %p51 = por %p49, %p50
      %p52 = scmp.ne.s32.totalorder %s38, %s39
      %p53 = scmp.eq.s32.totalorder %s17, 1
      %p54 = por %p52, %p53
      %p56 = scmp.ne.s32.totalorder %s39, %s55
      %p57 = scmp.eq.s32.totalorder %s17, 0
      %p58 = por %p56, %p57
      %s59 = sadd.s32 %s18, %s19
      %s60 = sadd.s32 %s30, %s26
      %s61 = ssub.s32 %s59, %s60
      %p62 = scmp.eq.s32.totalorder %s61, 0
      %s64 = sadd.s32 %s63, 1
      %s65 = scalar_select %p62, %s63, %s64
      %p68 = pneg %p62
      %p69 = scmp.eq.s32.totalorder %s11, 1
      %p70 = por %p68, %p69
      %p71 = scmp.ne.s32.totalorder %s63, %s66
      %p72 = scmp.eq.s32.totalorder %s11, 0
      %p73 = por %p71, %p72
      %p74 = scmp.ne.s32.totalorder %s63, %s66
      %p75 = scmp.eq.s32.totalorder %s16, 1
      %p76 = por %p74, %p75
      %p77 = scmp.ne.s32.totalorder %s66, %s67
      %p78 = scmp.eq.s32.totalorder %s16, 0
      %p79 = por %p77, %p78
      %p80 = scmp.ne.s32.totalorder %s66, %s67
      %p81 = scmp.eq.s32.totalorder %s17, 1
      %p82 = por %p80, %p81
      %p84 = scmp.ne.s32.totalorder %s67, %s83
      %p85 = scmp.eq.s32.totalorder %s17, 0
      %p86 = por %p84, %p85
      %s87 = ssub.s32 %s18, %s30
      %p88 = scmp.eq.s32.totalorder %s87, 0
      %s90 = sadd.s32 %s89, 1
      %s91 = scalar_select %p88, %s89, %s90
      %p94 = pneg %p88
      %p95 = scmp.eq.s32.totalorder %s11, 1
      %p96 = por %p94, %p95
      %p97 = scmp.ne.s32.totalorder %s89, %s92
      %p98 = scmp.eq.s32.totalorder %s11, 0
      %p99 = por %p97, %p98
      %p100 = scmp.ne.s32.totalorder %s89, %s92
      %p101 = scmp.eq.s32.totalorder %s16, 1
      %p102 = por %p100, %p101
      %p103 = scmp.ne.s32.totalorder %s92, %s93
      %p104 = scmp.eq.s32.totalorder %s16, 0
      %p105 = por %p103, %p104
      %p106 = scmp.ne.s32.totalorder %s92, %s93
      %p107 = scmp.eq.s32.totalorder %s17, 1
      %p108 = por %p106, %p107
      %p110 = scmp.ne.s32.totalorder %s93, %s109
      %p111 = scmp.eq.s32.totalorder %s17, 0
      %p112 = por %p110, %p111
      %p113 = scmp.le.s32.totalorder 1, %s11
      %p114 = scmp.lt.s32.totalorder %s11, 3
      %p115 = pnand %p113, %p114
      %p116 = pneg %p115
      // Predicated region
      $region9: #{tpu_custom_call.1} parent=5 // pred_check
        _
      $region10: #{tpu_custom_call.1} parent=5 // pred_check_branch
        %118 = sbr.rel (%p115) target = $region12
      $region11: #{tpu_custom_call.1} parent=5 // pred_region
        %s119 = ssub.s32 %s11, 1
      $region12: #{tpu_custom_call.1} parent=5 // pred_fallthru
        _
      %p120 = scmp.lt.s32.totalorder %s11, 2
      // Predicated region
      $region13: #{tpu_custom_call.1} parent=5 // pred_check
        %p121 = pneg %p120
      $region14: #{tpu_custom_call.1} parent=5 // pred_check_branch
        %123 = sbr.rel (%p121) target = $region16
      $region15: #{tpu_custom_call.1} parent=5 // pred_region
        // Predicated region
        $region17: #{tpu_custom_call.1} parent=15 // pred_check
          %p124 = pneg %p45
        $region18: #{tpu_custom_call.1} parent=15 // pred_check_branch
          %126 = sbr.rel (%p124) target = $region20
        $region19: #{tpu_custom_call.1} parent=15 // pred_region
          %s127 = sadd.s32 %s18, %s19
          %s128 = smul.u32 2, %s127
          %p129 = scmp.lt.s32.totalorder %s128, 3
          %s130 = scalar_select %p129, %s128, 3
          %s131 = scalar_lea.vmem %s0, %s130
          %s132 = sadd.s32 %s18, %s19
          %s133 = smul.u32 2, %s132
        $region20: #{tpu_custom_call.1} parent=15 // pred_fallthru
          _
        // Predicated region
        $region21: #{tpu_custom_call.1} parent=15 // pred_check
          %p134 = pneg %p73
        $region22: #{tpu_custom_call.1} parent=15 // pred_check_branch
          %136 = sbr.rel (%p134) target = $region24
        $region23: #{tpu_custom_call.1} parent=15 // pred_region
          %s137 = sadd.s32 %s18, %s19
          %s138 = smul.u32 32, %s137
          %p139 = scmp.lt.s32.totalorder %s138, 63
          %s140 = scalar_select %p139, %s138, 63
          %s141 = smul.addr %s140, 8
          %s142 = scalar_lea.vmem %s1, %s141
          %s143 = sadd.s32 %s18, %s19
          %s144 = smul.u32 32, %s143
        $region24: #{tpu_custom_call.1} parent=15 // pred_fallthru
          _
      $region16: #{tpu_custom_call.1} parent=5 // pred_fallthru
        _
      %p145 = scmp.le.s32.totalorder 1, %s11
      %p146 = scmp.lt.s32.totalorder %s11, 3
      %p147 = pnand %p145, %p146
      %p148 = pneg %p147
      // Predicated region
      $region25: #{tpu_custom_call.1} parent=5 // pred_check
        _
      $region26: #{tpu_custom_call.1} parent=5 // pred_check_branch
        %150 = sbr.rel (%p147) target = $region28
      $region27: #{tpu_custom_call.1} parent=5 // pred_region
        %s151 = ssub.s32 %s11, 1
        %s152 = sadd.s32 %s20, %s21
        %s153 = smul.u32 2, %s152
        %p154 = scmp.lt.s32.totalorder %s153, 3
        %s155 = scalar_select %p154, %s153, 3
        %s156 = scalar_lea.vmem %s0, %s155
        %p157 = pneg %p51
        %p158 = pneg %p48
        %s159 = sadd.s32 %s20, %s21
        %s160 = smul.u32 32, %s159
        %p161 = scmp.lt.s32.totalorder %s160, 63
        %s162 = scalar_select %p161, %s160, 63
        %s163 = smul.addr %s162, 8
        %s164 = scalar_lea.vmem %s1, %s163
        %p165 = pneg %p79
        %p166 = pneg %p76
        %p167 = pneg %p105
        %p168 = pneg %p102
        %s169 = sand.u32 %s92, 1
        %s170 = scalar_lea.sflag [#allocation3], %s169
        %s171 = sand.u32 %s92, 1
        %s172 = smul.addr %s171, 4
        %s173 = scalar_lea.vmem [#allocation2], %s172
        %s174 = sadd.s32 %s20, %s21
        %s175 = smul.u32 2, %s174
        %p176 = scmp.lt.s32.totalorder %s175, 3
        %s177 = scalar_select %p176, %s175, 3
        %s178 = scalar_lea.vmem %s0, %s177
        %s179 = sadd.s32 %s20, %s21
        %s180 = smul.u32 2, %s179
        %s181 = sadd.s32 %s20, %s21
        %s182 = smul.u32 32, %s181
        %p183 = scmp.lt.s32.totalorder %s182, 63
        %s184 = scalar_select %p183, %s182, 63
        %s185 = smul.addr %s184, 8
        %s186 = scalar_lea.vmem %s1, %s185
        %s187 = sadd.s32 %s20, %s21
        %s188 = smul.u32 32, %s187
        %p189 = scmp.eq.s32.totalorder %s21, 0
        // Predicated region
        $region29: #{tpu_custom_call.1} parent=27 // pred_check
          %p190 = pneg %p189
        $region30: #{tpu_custom_call.1} parent=27 // pred_check_branch
          %192 = sbr.rel (%p190) target = $region32
        $region31: #{tpu_custom_call.1} parent=27 // pred_region
          %vm193 = vcmask 257024
          %194 = vst.msk [vmem:[%s173] sm:$0xf] %vm193, 0.0
        $region32: #{tpu_custom_call.1} parent=27 // pred_fallthru
          _
        %v195 = vld [vmem:[%s178] sm:$0x3]
        %v196 = vlaneseq
        %v197 = vshrl.u32 %v196, 7
        %v198 = vld [vmem:[%s186] sm:$0xff]
        %v199 = vld [vmem:[%s186 + $0x8] sm:$0xff]
        %v200 = vld [vmem:[%s186 + $0x10] sm:$0xff]
        %v201 = vld [vmem:[%s186 + $0x18] sm:$0xff]
        %v202 = vld [vmem:[%s186 + $0x20] sm:$0xff]
        %v203 = vld [vmem:[%s186 + $0x28] sm:$0xff]
        %v204 = vld [vmem:[%s186 + $0x30] sm:$0xff]
        %v205 = vld [vmem:[%s186 + $0x38] sm:$0xff]
        %v206 = vld [vmem:[%s186 + $0x40] sm:$0xff]
        %v207 = vld [vmem:[%s186 + $0x48] sm:$0xff]
        %v208 = vld [vmem:[%s186 + $0x50] sm:$0xff]
        %v209 = vld [vmem:[%s186 + $0x58] sm:$0xff]
        %v210 = vld [vmem:[%s186 + $0x60] sm:$0xff]
        %v211 = vld [vmem:[%s186 + $0x68] sm:$0xff]
        %v212 = vld [vmem:[%s186 + $0x70] sm:$0xff]
        %v213 = vld [vmem:[%s186 + $0x78] sm:$0xff]
        %v214 = vld [vmem:[%s186 + $0x80] sm:$0xff]
        %v215 = vld [vmem:[%s186 + $0x88] sm:$0xff]
        %v216 = vld [vmem:[%s186 + $0x90] sm:$0xff]
        %v217 = vld [vmem:[%s186 + $0x98] sm:$0xff]
        %v218 = vld [vmem:[%s186 + $0xa0] sm:$0xff]
        %v219 = vld [vmem:[%s186 + $0xa8] sm:$0xff]
        %v220 = vld [vmem:[%s186 + $0xb0] sm:$0xff]
        %v221 = vld [vmem:[%s186 + $0xb8] sm:$0xff]
        %v222 = vld [vmem:[%s186 + $0xc0] sm:$0xff]
        %v223 = vld [vmem:[%s186 + $0xc8] sm:$0xff]
        %v224 = vld [vmem:[%s186 + $0xd0] sm:$0xff]
        %v225 = vld [vmem:[%s186 + $0xd8] sm:$0xff]
        %v226 = vld [vmem:[%s186 + $0xe0] sm:$0xff]
        %v227 = vld [vmem:[%s186 + $0xe8] sm:$0xff]
        %v228 = vld [vmem:[%s186 + $0xf0] sm:$0xff]
        %v229 = vld [vmem:[%s186 + $0xf8] sm:$0xff]
        %v230 = vlaneseq
        %v231 = vshrl.u32 %v230, 7
        %v232 = vsub.s32 0, %v231
        %v233 = vrot.slane %v195, %v232
        %v234 = vlaneseq
        %v235 = vshrl.u32 %v234, 7
        %v236 = vsub.s32 1, %v235
        %v237 = vrot.slane %v195, %v236
        %vm238 = vcmp.eq.s32.totalorder %v197, %v233
        %vm239 = vcmp.eq.s32.totalorder %v197, %v237
        %v240 = vsel %vm238, 1, 0
        %v241 = vsel %vm239, 1, 0
        %v242 = vcvt.s32.f32 %v240
        %v243 = vcvt.s32.f32 %v241
        %v244 = vld [vmem:[%s173] sm:$0xf]
        %245 = vmatprep.subr.mxu0 0.0
        %246 = vmatpush1.msra.mxu0 %v198
        %247 = vmatprep.subr.mxu0 0.0
        %248 = vmatpush1.msra.mxu0 %v199
        %249 = vmatprep.subr.mxu0 0.0
        %250 = vmatpush1.msra.mxu0 %v200
        %251 = vmatprep.subr.mxu0 0.0
        %252 = vmatpush1.msra.mxu0 %v201
        %253 = vmatprep.subr.mxu0 0.0
        %254 = vmatpush1.msra.mxu0 %v202
        %255 = vmatprep.subr.mxu0 0.0
        %256 = vmatpush1.msra.mxu0 %v203
        %257 = vmatprep.subr.mxu0 0.0
        %258 = vmatpush1.msra.mxu0 %v204
        %259 = vmatprep.subr.mxu0 0.0
        %260 = vmatpush1.msra.mxu0 %v205
        %261 = vmatprep.subr.mxu0 0.0
        %262 = vmatpush1.msra.mxu0 %v206
        %263 = vmatprep.subr.mxu0 0.0
        %264 = vmatpush1.msra.mxu0 %v207
        %265 = vmatprep.subr.mxu0 0.0
        %266 = vmatpush1.msra.mxu0 %v208
        %267 = vmatprep.subr.mxu0 0.0
        %268 = vmatpush1.msra.mxu0 %v209
        %269 = vmatprep.subr.mxu0 0.0
        %270 = vmatpush1.msra.mxu0 %v210
        %271 = vmatprep.subr.mxu0 0.0
        %272 = vmatpush1.msra.mxu0 %v211
        %273 = vmatprep.subr.mxu0 0.0
        %274 = vmatpush1.msra.mxu0 %v212
        %275 = vmatprep.subr.mxu0 0.0
        %276 = vmatpush1.msra.mxu0 %v213
        %277 = vmatprep.subr.mxu0 0.0
        %278 = vmatpush1.msra.mxu0 %v214
        %279 = vmatprep.subr.mxu0 0.0
        %280 = vmatpush1.msra.mxu0 %v215
        %281 = vmatprep.subr.mxu0 0.0
        %282 = vmatpush1.msra.mxu0 %v216
        %283 = vmatprep.subr.mxu0 0.0
        %284 = vmatpush1.msra.mxu0 %v217
        %285 = vmatprep.subr.mxu0 0.0
        %286 = vmatpush1.msra.mxu0 %v218
        %287 = vmatprep.subr.mxu0 0.0
        %288 = vmatpush1.msra.mxu0 %v219
        %289 = vmatprep.subr.mxu0 0.0
        %290 = vmatpush1.msra.mxu0 %v220
        %291 = vmatprep.subr.mxu0 0.0
        %292 = vmatpush1.msra.mxu0 %v221
        %293 = vmatprep.subr.mxu0 0.0
        %294 = vmatpush1.msra.mxu0 %v222
        %295 = vmatprep.subr.mxu0 0.0
        %296 = vmatpush1.msra.mxu0 %v223
        %297 = vmatprep.subr.mxu0 0.0
        %298 = vmatpush1.msra.mxu0 %v224
        %299 = vmatprep.subr.mxu0 0.0
        %300 = vmatpush1.msra.mxu0 %v225
        %301 = vmatprep.subr.mxu0 0.0
        %302 = vmatpush1.msra.mxu0 %v226
        %303 = vmatprep.subr.mxu0 0.0
        %304 = vmatpush1.msra.mxu0 %v227
        %305 = vmatprep.subr.mxu0 0.0
        %306 = vmatpush1.msra.mxu0 %v228
        %307 = vmatprep.subr.mxu0 0.0
        %308 = vmatpush1.msra.mxu0 %v229
        %309 = vmatprep.mubr.f32.mxu0 %v243
        %310 = vmatmul.mubr.f32.gmra.mrb[0].mxu0 %v242
        %v311 = vpop.f32.mrb[0].mxu0
        %v312 = vadd.f32 0.0, %v311
        %v313 = vpop.f32.mrb[0].mxu0
        %314 = vdwg.mxu0
        %v315 = vadd.f32 %v244, %v312
        %vm316 = vcmask 257024
        %317 = vst.msk [vmem:[%s173] sm:$0xf] %vm316, %v315
        %s318 = sand.u32 %s92, 1
        %s319 = scalar_lea.sflag [#allocation3], %s318
        %s320 = sand.u32 %s92, 1
        %s321 = smul.addr %s320, 4
        %s322 = scalar_lea.vmem [#allocation2], %s321
        // Predicated region
        $region33: #{tpu_custom_call.1} parent=27 // pred_check
          %p323 = pneg %p102
        $region34: #{tpu_custom_call.1} parent=27 // pred_check_branch
          %325 = sbr.rel (%p323) target = $region36
        $region35: #{tpu_custom_call.1} parent=27 // pred_region
          %s327 = ssub.s32 64, 64
          %328 = vsyncadd %s319, %s327
          %s329 = smul.addr %s20, 64
          %s330 = scalar_lea.hbm %s2, %s329
          %s332 = sshll.u32 %s322, 4
          %s333 = int_to_ptr.vmem [resolvable:$true] %s332
          %335 = dma.vmem_to_hbm [thread:$0]  %s333, 64, %s330, %s319
        $region36: #{tpu_custom_call.1} parent=27 // pred_fallthru
          _
      $region28: #{tpu_custom_call.1} parent=5 // pred_fallthru
        _
      %p336 = scmp.le.s32.totalorder 2, %s11
      // Predicated region
      $region37: #{tpu_custom_call.1} parent=5 // pred_check
        %p337 = pneg %p336
      $region38: #{tpu_custom_call.1} parent=5 // pred_check_branch
        %339 = sbr.rel (%p337) target = $region40
      $region39: #{tpu_custom_call.1} parent=5 // pred_region
        %s340 = ssub.s32 %s11, 2
        // Predicated region
        $region41: #{tpu_custom_call.1} parent=39 // pred_check
          %p341 = pneg %p108
        $region42: #{tpu_custom_call.1} parent=39 // pred_check_branch
          %343 = sbr.rel (%p341) target = $region44
        $region43: #{tpu_custom_call.1} parent=39 // pred_region
          %s344 = sand.u32 %s93, 1
          %s345 = scalar_lea.sflag [#allocation3], %s344
          %s346 = sand.u32 %s93, 1
          %s347 = smul.addr %s346, 4
          %s348 = scalar_lea.vmem [#allocation2], %s347
          %349 = dma.done %s345, 64
        $region44: #{tpu_custom_call.1} parent=39 // pred_fallthru
          _
      $region40: #{tpu_custom_call.1} parent=5 // pred_fallthru
        _
    $region6: #{tpu_custom_call.1} parent=1 // loop_footer
      %s15 = sadd.s32 1, %s11
    $region7: #{tpu_custom_call.1} parent=1 // loop_footer_branch
      %10 = sbr.rel target = $region3
    $region8: #{tpu_custom_call.1} parent=1 // loop_exit
      _
    %350 = vsyncpa [#allocation3], 1
    %s351 = scalar_lea.sflag [#allocation3], 1
    %352 = vsyncpa %s351, 1

</llo_original>
